<compile_context>
chip_gen: v7x
topology: tpu7x:2x2x1
jax: 0.10.0
libtpu: 0.0.40
codegen_flags: <defaults>
</compile_context>

<pallas_src>
import jax
import jax.numpy as jnp
from jax.experimental import pallas as pl
from jax.experimental.pallas import tpu as pltpu

IN_DIM, H1_DIM, H2_DIM, OUT_DIM = 8, 16, 16, 4
OUT_PAD = 128   # pad out_dim 4 -> 128 so output stores are lane-dense (unmasked)
TB_MAX = 1024   # batch-tile rows (sweep 512-2048); sized for v7x 32 MiB scoped VMEM


def _round_up(n, m):
    return ((n + m - 1) // m) * m


def mlp_kernel(x_ref, w1_ref, b1_ref, w2_ref, b2_ref, w3_ref, b3_ref, o_ref):
    # Three bf16 x bf16 -> f32 MXU matmuls, bias-add/ReLU on the VPU in f32.
    x = x_ref[...]                                                    # (TB, 8) bf16
    h1 = jnp.dot(x, w1_ref[...], preferred_element_type=jnp.float32)  # (TB, 16) f32
    h1 = jnp.maximum(h1 + b1_ref[...], 0.0)
    h2 = jnp.dot(h1.astype(jnp.bfloat16), w2_ref[...],
                 preferred_element_type=jnp.float32)                  # (TB, 16) f32
    h2 = jnp.maximum(h2 + b2_ref[...], 0.0)
    h3 = jnp.dot(h2.astype(jnp.bfloat16), w3_ref[...],
                 preferred_element_type=jnp.float32)                  # (TB, 128) f32
    o_ref[...] = h3 + b3_ref[...]                                     # lane-dense store


def mlp_forward(x, params):
    """x: (batch, 8) f32. Returns (batch, 4) f32."""
    w1, b1, w2, b2, w3, b3 = params
    batch = x.shape[0]

    # Pad the last layer to 128 output lanes (zeros) so stores are unmasked.
    w3p = jnp.zeros((w3.shape[0], OUT_PAD), w3.dtype).at[:, :OUT_DIM].set(w3)
    b3p = jnp.zeros((1, OUT_PAD), b3.dtype).at[:, :OUT_DIM].set(b3)

    # Batch tiling: tile is a multiple of 8 sublanes, capped at TB_MAX; pad the
    # batch so every grid step sees a full tile (no partial blocks).
    tb = min(TB_MAX, _round_up(batch, 8))
    padded = _round_up(batch, tb)
    if padded != batch:
        x = jnp.pad(x, ((0, padded - batch), (0, 0)))

    # bf16 on the streamed input (and the tiny resident weights); biases stay f32.
    x_bf = x.astype(jnp.bfloat16)
    w1_bf = w1.astype(jnp.bfloat16)
    w2_bf = w2.astype(jnp.bfloat16)
    w3_bf = w3p.astype(jnp.bfloat16)

    grid = (padded // tb,)

    out = pl.pallas_call(
        mlp_kernel,
        out_shape=jax.ShapeDtypeStruct((padded, OUT_PAD), jnp.float32),
        grid=grid,
        in_specs=[
            pl.BlockSpec((tb, IN_DIM), lambda i: (i, 0)),        # x: streamed per tile
            pl.BlockSpec(w1_bf.shape, lambda i: (0, 0)),         # weights/biases stay
            pl.BlockSpec(b1.shape, lambda i: (0, 0)),            # resident (constant
            pl.BlockSpec(w2_bf.shape, lambda i: (0, 0)),         # index_map -> no
            pl.BlockSpec(b2.shape, lambda i: (0, 0)),            # re-DMA per step)
            pl.BlockSpec(w3_bf.shape, lambda i: (0, 0)),
            pl.BlockSpec(b3p.shape, lambda i: (0, 0)),
        ],
        out_specs=pl.BlockSpec((tb, OUT_PAD), lambda i: (i, 0)),
        compiler_params=pltpu.CompilerParams(
            dimension_semantics=("parallel",),  # megacore sharding on v7x
        ),
    )(x_bf, w1_bf, b1, w2_bf, b2, w3_bf, b3p)

    return out[:batch, :OUT_DIM]


def mlp_reference(x, params):
    """Plain-JAX reference with the same bf16-in / f32-accumulate numerics."""
    w1, b1, w2, b2, w3, b3 = params
    h1 = jnp.dot(x.astype(jnp.bfloat16), w1.astype(jnp.bfloat16),
                 preferred_element_type=jnp.float32) + b1
    h1 = jnp.maximum(h1, 0.0)
    h2 = jnp.dot(h1.astype(jnp.bfloat16), w2.astype(jnp.bfloat16),
                 preferred_element_type=jnp.float32) + b2
    h2 = jnp.maximum(h2, 0.0)
    h3 = jnp.dot(h2.astype(jnp.bfloat16), w3.astype(jnp.bfloat16),
                 preferred_element_type=jnp.float32) + b3
    return h3


def mlp_reference_f32(x, params):
    """Full-f32 reference (matches the PyTorch module exactly)."""
    w1, b1, w2, b2, w3, b3 = params
    h = jnp.maximum(x @ w1 + b1, 0.0)
    h = jnp.maximum(h @ w2 + b2, 0.0)
    return h @ w3 + b3


def init_params(key):
    # Deterministic init mimicking PyTorch nn.Linear default (uniform +- 1/sqrt(fan_in)).
    def linear(key, fan_in, fan_out):
        kw, kb = jax.random.split(key)
        bound = 1.0 / jnp.sqrt(float(fan_in))
        w = jax.random.uniform(kw, (fan_in, fan_out), jnp.float32, -bound, bound)
        b = jax.random.uniform(kb, (1, fan_out), jnp.float32, -bound, bound)
        return w, b

    k1, k2, k3 = jax.random.split(key, 3)
    w1, b1 = linear(k1, IN_DIM, H1_DIM)
    w2, b2 = linear(k2, H1_DIM, H2_DIM)
    w3, b3 = linear(k3, H2_DIM, OUT_DIM)
    return w1, b1, w2, b2, w3, b3


if __name__ == "__main__":
    key = jax.random.PRNGKey(0)
    kx, kx2, kp = jax.random.split(key, 3)
    params = init_params(kp)

    # Small check (single grid step).
    batch = 8
    x = jax.random.normal(kx, (batch, IN_DIM), jnp.float32)
    out = jax.block_until_ready(mlp_forward(x, params))
    assert out.shape == (batch, OUT_DIM)
    ref = mlp_reference(x, params)
    assert jnp.allclose(out, ref, atol=1e-3, rtol=1e-3)
    ref_f32 = mlp_reference_f32(x, params)
    assert jnp.allclose(out, ref_f32, atol=5e-2, rtol=5e-2)

    # Exercise the pipelined multi-step grid + batch padding path.
    batch2 = 2056  # -> tb=1024, padded=3072, grid=(3,)
    x2 = jax.random.normal(kx2, (batch2, IN_DIM), jnp.float32)
    out2 = jax.block_until_ready(mlp_forward(x2, params))
    assert out2.shape == (batch2, OUT_DIM)
    ref2 = mlp_reference(x2, params)
    assert jnp.allclose(out2, ref2, atol=1e-3, rtol=1e-3)

    print("KERNEL_OK")
</pallas_src>

<mosaic_0001>
module attributes {stable_mosaic.version = 11 : i64} {
  func.func @mlp_kernel(%arg0: i32, %arg1: memref<8x8xbf16, #tpu.memory_space<vmem>>, %arg2: memref<8x16xbf16, #tpu.memory_space<vmem>>, %arg3: memref<1x16xf32, #tpu.memory_space<vmem>>, %arg4: memref<16x16xbf16, #tpu.memory_space<vmem>>, %arg5: memref<1x16xf32, #tpu.memory_space<vmem>>, %arg6: memref<16x128xbf16, #tpu.memory_space<vmem>>, %arg7: memref<1x128xf32, #tpu.memory_space<vmem>>, %arg8: memref<8x128xf32, #tpu.memory_space<vmem>>) attributes {dimension_semantics = [#tpu.dimension_semantics<parallel>], iteration_bounds = array<i64: 1>, scalar_prefetch = 0 : i64, scratch_operands = 0 : i64, tpu.core_type = #tpu.core_type<tc>, window_params = [{transform_indices = @transform_0, window_bounds = array<i64: 8, 8>}, {pipeline_mode = #tpu.pipeline_mode<synchronous>, transform_indices = @transform_1, window_bounds = array<i64: 8, 16>}, {pipeline_mode = #tpu.pipeline_mode<synchronous>, transform_indices = @transform_2, window_bounds = array<i64: 1, 16>}, {pipeline_mode = #tpu.pipeline_mode<synchronous>, transform_indices = @transform_3, window_bounds = array<i64: 16, 16>}, {pipeline_mode = #tpu.pipeline_mode<synchronous>, transform_indices = @transform_4, window_bounds = array<i64: 1, 16>}, {pipeline_mode = #tpu.pipeline_mode<synchronous>, transform_indices = @transform_5, window_bounds = array<i64: 16, 128>}, {pipeline_mode = #tpu.pipeline_mode<synchronous>, transform_indices = @transform_6, window_bounds = array<i64: 1, 128>}, {transform_indices = @transform_7, window_bounds = array<i64: 8, 128>}]} {
    %c0 = arith.constant 0 : index
    %c0_0 = arith.constant 0 : index
    %0 = vector.load %arg1[%c0, %c0_0] : memref<8x8xbf16, #tpu.memory_space<vmem>>, vector<8x8xbf16>
    %c0_1 = arith.constant 0 : index
    %c0_2 = arith.constant 0 : index
    %1 = vector.load %arg2[%c0_1, %c0_2] : memref<8x16xbf16, #tpu.memory_space<vmem>>, vector<8x16xbf16>
    %cst = arith.constant dense<0.000000e+00> : vector<8x16xf32>
    %2 = tpu.matmul %0, %1, %cst {dimension_numbers = #tpu.dot_dimension_numbers<[1], [0], [0], [1], [0, 0, 1, 1], [], []>} : vector<8x8xbf16>, vector<8x16xbf16>, vector<8x16xf32> -> vector<8x16xf32>
    %c0_3 = arith.constant 0 : index
    %c0_4 = arith.constant 0 : index
    %3 = vector.load %arg3[%c0_3, %c0_4] : memref<1x16xf32, #tpu.memory_space<vmem>>, vector<1x16xf32>
    %4 = vector.broadcast %3 : vector<1x16xf32> to vector<8x16xf32>
    %5 = arith.addf %2, %4 : vector<8x16xf32>
    %cst_5 = arith.constant 0.000000e+00 : f32
    %6 = vector.broadcast %cst_5 : f32 to vector<8x16xf32>
    %7 = arith.maximumf %5, %6 : vector<8x16xf32>
    %8 = arith.truncf %7 : vector<8x16xf32> to vector<8x16xbf16>
    %c0_6 = arith.constant 0 : index
    %c0_7 = arith.constant 0 : index
    %9 = vector.load %arg4[%c0_6, %c0_7] : memref<16x16xbf16, #tpu.memory_space<vmem>>, vector<16x16xbf16>
    %cst_8 = arith.constant dense<0.000000e+00> : vector<8x16xf32>
    %10 = tpu.matmul %8, %9, %cst_8 {dimension_numbers = #tpu.dot_dimension_numbers<[1], [0], [0], [1], [0, 0, 1, 1], [], []>} : vector<8x16xbf16>, vector<16x16xbf16>, vector<8x16xf32> -> vector<8x16xf32>
    %c0_9 = arith.constant 0 : index
    %c0_10 = arith.constant 0 : index
    %11 = vector.load %arg5[%c0_9, %c0_10] : memref<1x16xf32, #tpu.memory_space<vmem>>, vector<1x16xf32>
    %12 = vector.broadcast %11 : vector<1x16xf32> to vector<8x16xf32>
    %13 = arith.addf %10, %12 : vector<8x16xf32>
    %cst_11 = arith.constant 0.000000e+00 : f32
    %14 = vector.broadcast %cst_11 : f32 to vector<8x16xf32>
    %15 = arith.maximumf %13, %14 : vector<8x16xf32>
    %16 = arith.truncf %15 : vector<8x16xf32> to vector<8x16xbf16>
    %c0_12 = arith.constant 0 : index
    %c0_13 = arith.constant 0 : index
    %17 = vector.load %arg6[%c0_12, %c0_13] : memref<16x128xbf16, #tpu.memory_space<vmem>>, vector<16x128xbf16>
    %cst_14 = arith.constant dense<0.000000e+00> : vector<8x128xf32>
    %18 = tpu.matmul %16, %17, %cst_14 {dimension_numbers = #tpu.dot_dimension_numbers<[1], [0], [0], [1], [0, 0, 1, 1], [], []>} : vector<8x16xbf16>, vector<16x128xbf16>, vector<8x128xf32> -> vector<8x128xf32>
    %c0_15 = arith.constant 0 : index
    %c0_16 = arith.constant 0 : index
    %19 = vector.load %arg7[%c0_15, %c0_16] : memref<1x128xf32, #tpu.memory_space<vmem>>, vector<1x128xf32>
    %20 = vector.broadcast %19 : vector<1x128xf32> to vector<8x128xf32>
    %21 = arith.addf %18, %20 : vector<8x128xf32>
    %c0_17 = arith.constant 0 : index
    %c0_18 = arith.constant 0 : index
    %22 = vector.load %arg8[%c0_17, %c0_18] : memref<8x128xf32, #tpu.memory_space<vmem>>, vector<8x128xf32>
    tpu.vector_store %arg8[%c0_17, %c0_18], %21 {strides = array<i32>} : memref<8x128xf32, #tpu.memory_space<vmem>>, vector<8x128xf32>,
    return
  }
  func.func @transform_0(%arg0: i32) -> (i32, i32) {
    %c0_i32 = arith.constant 0 : i32
    %c0_i32_0 = arith.constant 0 : i32
    return %arg0, %c0_i32 : i32, i32
  }
  func.func @transform_1(%arg0: i32) -> (i32, i32) {
    %c0_i32 = arith.constant 0 : i32
    %c0_i32_0 = arith.constant 0 : i32
    %c0_i32_1 = arith.constant 0 : i32
    return %c0_i32, %c0_i32_0 : i32, i32
  }
  func.func @transform_2(%arg0: i32) -> (i32, i32) {
    %c0_i32 = arith.constant 0 : i32
    %c0_i32_0 = arith.constant 0 : i32
    %c0_i32_1 = arith.constant 0 : i32
    return %c0_i32, %c0_i32_0 : i32, i32
  }
  func.func @transform_3(%arg0: i32) -> (i32, i32) {
    %c0_i32 = arith.constant 0 : i32
    %c0_i32_0 = arith.constant 0 : i32
    %c0_i32_1 = arith.constant 0 : i32
    return %c0_i32, %c0_i32_0 : i32, i32
  }
  func.func @transform_4(%arg0: i32) -> (i32, i32) {
    %c0_i32 = arith.constant 0 : i32
    %c0_i32_0 = arith.constant 0 : i32
    %c0_i32_1 = arith.constant 0 : i32
    return %c0_i32, %c0_i32_0 : i32, i32
  }
  func.func @transform_5(%arg0: i32) -> (i32, i32) {
    %c0_i32 = arith.constant 0 : i32
    %c0_i32_0 = arith.constant 0 : i32
    %c0_i32_1 = arith.constant 0 : i32
    return %c0_i32, %c0_i32_0 : i32, i32
  }
  func.func @transform_6(%arg0: i32) -> (i32, i32) {
    %c0_i32 = arith.constant 0 : i32
    %c0_i32_0 = arith.constant 0 : i32
    %c0_i32_1 = arith.constant 0 : i32
    return %c0_i32, %c0_i32_0 : i32, i32
  }
  func.func @transform_7(%arg0: i32) -> (i32, i32) {
    %c0_i32 = arith.constant 0 : i32
    %c0_i32_0 = arith.constant 0 : i32
    return %arg0, %c0_i32 : i32, i32
  }
}

</mosaic_0001>

<llo_original>
// kernel: tpu_custom_call.1
$region0: #{tpu_custom_call.1}
  #allocation0 [shape = 'u32[]', space=smem, size = 0x4, offset = 0x4, fixed_abs, tag = 'smem constant byte address 0x4 - core index']
  #allocation1 [shape = 'u32[144,128]{1,0:T(1,128)}', space=vmem, size = 0x12000, scoped, tag = 'internal scratch']
  %s0 = inlined_call_operand.hbm [shape: bf16[8,8], index: 0, kind: input, shape index: {}]
  %s1 = inlined_call_operand.hbm [shape: bf16[8,16], index: 1, kind: input, shape index: {}]
  %s2 = inlined_call_operand.vmem [shape: f32[1,16], index: 2, kind: input, shape index: {}]
  %s3 = inlined_call_operand.vmem [shape: bf16[16,16], index: 3, kind: input, shape index: {}]
  %s4 = inlined_call_operand.vmem [shape: f32[1,16], index: 4, kind: input, shape index: {}]
  %s5 = inlined_call_operand.vmem [shape: bf16[16,128], index: 5, kind: input, shape index: {}]
  %s6 = inlined_call_operand.vmem [shape: f32[1,128], index: 6, kind: input, shape index: {}]
  %s7 = inlined_call_operand.hbm [shape: f32[8,128], index: 7, kind: output, shape index: {}]
  %s8 = sld [smem:[#allocation0]]
  $region46: #{tpu_custom_call.1} parent=0
    _
  %s10 = ssub.s32 1, %s8
  %s11 = scalar_select 0, %s10, %s8
  $region1: #{tpu_custom_call.1} parent=0
    #allocation2 [shape = 'u8[2048]{0}', space=vmem, size = 0x800, scoped, tag = 'input window, operand 0, single buffered']
    #allocation3 [shape = 's32[1]{0}', space=sflag, size = 0x4, scoped, tag = 'scoped memory for tpu_custom_call.1']
    #allocation4 [shape = 's32[1]{0}', space=sflag, size = 0x4, scoped, tag = 'scoped memory for tpu_custom_call.1']
    #allocation5 [shape = 'u8[2048]{0}', space=vmem, size = 0x800, scoped, tag = 'input window, operand 1, single buffered']
    #allocation6 [shape = 's32[1]{0}', space=sflag, size = 0x4, scoped, tag = 'scoped memory for tpu_custom_call.1']
    #allocation7 [shape = 'u8[4096]{0}', space=vmem, size = 0x1000, scoped, tag = 'output window, operand 0, single buffered']
    %12 = vsyncpa [#allocation3], 0
    %13 = vsyncpa [#allocation6], 0
    %14 = vsyncpa [#allocation4], 0
    // Predicated region
    $region2: #{tpu_custom_call.1} parent=1 // pred_check
      _
    $region3: #{tpu_custom_call.1} parent=1 // pred_check_branch
      %16 = sbr.rel (0) target = $region5
    $region4: #{tpu_custom_call.1} parent=1 // pred_region
      %s18 = ssub.s32 64, 64
      %19 = vsyncadd [#allocation3], %s18
      %s21 = sshll.u32 [#allocation2], 4
      %s22 = int_to_ptr.vmem [resolvable:$true] %s21
      %24 = dma.hbm_to_vmem [thread:$0]  %s0, 64, %s22, [#allocation3]
    $region5: #{tpu_custom_call.1} parent=1 // pred_fallthru
      _
    // Predicated region
    $region6: #{tpu_custom_call.1} parent=1 // pred_check
      _
    $region7: #{tpu_custom_call.1} parent=1 // pred_check_branch
      %26 = sbr.rel (0) target = $region9
    $region8: #{tpu_custom_call.1} parent=1 // pred_region
      %s28 = ssub.s32 64, 64
      %29 = vsyncadd [#allocation6], %s28
      %s31 = sshll.u32 [#allocation5], 4
      %s32 = int_to_ptr.vmem [resolvable:$true] %s31
      %34 = dma.hbm_to_vmem [thread:$0]  %s1, 64, %s32, [#allocation6]
    $region9: #{tpu_custom_call.1} parent=1 // pred_fallthru
      _
    // Predicated region
    $region10: #{tpu_custom_call.1} parent=1 // pred_check
      _
    $region11: #{tpu_custom_call.1} parent=1 // pred_check_branch
      %36 = sbr.rel (0) target = $region13
    $region12: #{tpu_custom_call.1} parent=1 // pred_region
      _
    $region13: #{tpu_custom_call.1} parent=1 // pred_fallthru
      _
    // Predicated region
    $region14: #{tpu_custom_call.1} parent=1 // pred_check
      _
    $region15: #{tpu_custom_call.1} parent=1 // pred_check_branch
      %38 = sbr.rel (0) target = $region17
    $region16: #{tpu_custom_call.1} parent=1 // pred_region
      _
    $region17: #{tpu_custom_call.1} parent=1 // pred_fallthru
      _
    // Predicated region
    $region18: #{tpu_custom_call.1} parent=1 // pred_check
      _
    $region19: #{tpu_custom_call.1} parent=1 // pred_check_branch
      %40 = sbr.rel (0) target = $region21
    $region20: #{tpu_custom_call.1} parent=1 // pred_region
      _
    $region21: #{tpu_custom_call.1} parent=1 // pred_fallthru
      _
    // Predicated region
    $region22: #{tpu_custom_call.1} parent=1 // pred_check
      _
    $region23: #{tpu_custom_call.1} parent=1 // pred_check_branch
      %42 = sbr.rel (0) target = $region25
    $region24: #{tpu_custom_call.1} parent=1 // pred_region
      _
    $region25: #{tpu_custom_call.1} parent=1 // pred_fallthru
      _
    // Predicated region
    $region26: #{tpu_custom_call.1} parent=1 // pred_check
      _
    $region27: #{tpu_custom_call.1} parent=1 // pred_check_branch
      %44 = sbr.rel (0) target = $region29
    $region28: #{tpu_custom_call.1} parent=1 // pred_region
      _
    $region29: #{tpu_custom_call.1} parent=1 // pred_fallthru
      _
    // Predicated region
    $region30: #{tpu_custom_call.1} parent=1 // pred_check
      _
    $region31: #{tpu_custom_call.1} parent=1 // pred_check_branch
      %46 = sbr.rel (0) target = $region33
    $region32: #{tpu_custom_call.1} parent=1 // pred_region
      %47 = dma.done [#allocation3], 64
    $region33: #{tpu_custom_call.1} parent=1 // pred_fallthru
      _
    // Predicated region
    $region34: #{tpu_custom_call.1} parent=1 // pred_check
      _
    $region35: #{tpu_custom_call.1} parent=1 // pred_check_branch
      %49 = sbr.rel (0) target = $region37
    $region36: #{tpu_custom_call.1} parent=1 // pred_region
      %50 = dma.done [#allocation6], 64
    $region37: #{tpu_custom_call.1} parent=1 // pred_fallthru
      _
    %v52 = vld [vmem:[#allocation2] sm:$0xf]
    %v53 = vld [vmem:[#allocation5] sm:$0xf]
    %v54 = vld [vmem:[%s2] sm:$0x1]
    %v56 = vlaneseq
    %v57 = vshrl.u32 %v56, 7
    %v58 = vsub.s32 0, %v57
    %v59 = vrot.slane %v54, %v58
    %vm61 = vcmask 64512
    %v63 = vsel %vm61, %v52, 0
    %vm65 = vcmask 1043456
    %v67 = vsel %vm65, %v53, 0
    %69 = vmatprep.subr.bf16.mxu0 0
    %70 = vmatpush1.bf16.msra.mxu0 %v67
    %71 = vmatprep.subr.bf16.mxu0 0
    %72 = vmatpush1.bf16.msra.mxu0 0
    %73 = vmatprep.subr.bf16.mxu0 0
    %74 = vmatpush1.bf16.msra.mxu0 0
    %75 = vmatprep.subr.bf16.mxu0 0
    %76 = vmatpush1.bf16.msra.mxu0 0
    %77 = vmatprep.subr.bf16.mxu0 0
    %78 = vmatpush1.bf16.msra.mxu0 0
    %79 = vmatprep.subr.bf16.mxu0 0
    %80 = vmatpush1.bf16.msra.mxu0 0
    %81 = vmatprep.subr.bf16.mxu0 0
    %82 = vmatpush1.bf16.msra.mxu0 0
    %83 = vmatprep.subr.bf16.mxu0 0
    %84 = vmatpush1.bf16.msra.mxu0 0
    %85 = vmatprep.subr.bf16.mxu0 0
    %86 = vmatpush1.bf16.msra.mxu0 0
    %87 = vmatprep.subr.bf16.mxu0 0
    %88 = vmatpush1.bf16.msra.mxu0 0
    %89 = vmatprep.subr.bf16.mxu0 0
    %90 = vmatpush1.bf16.msra.mxu0 0
    %91 = vmatprep.subr.bf16.mxu0 0
    %92 = vmatpush1.bf16.msra.mxu0 0
    %93 = vmatprep.subr.bf16.mxu0 0
    %94 = vmatpush1.bf16.msra.mxu0 0
    %95 = vmatprep.subr.bf16.mxu0 0
    %96 = vmatpush1.bf16.msra.mxu0 0
    %97 = vmatprep.subr.bf16.mxu0 0
    %98 = vmatpush1.bf16.msra.mxu0 0
    %99 = vmatprep.subr.bf16.mxu0 0
    %100 = vmatpush1.bf16.msra.mxu0 0
    %101 = vmatprep.mubr.bf16.mxu0 0
    %102 = vmatmul.mubr.bf16.gmra.mrb[0].mxu0 %v63
    %v103 = vpop.f32.mrb[0].mxu0
    %v104 = vadd.f32 %v59, %v103
    %v105 = vpop.f32.mrb[0].mxu0
    %v106 = vpop.f32.mrb[0].mxu0
    %v107 = vpop.f32.mrb[0].mxu0
    %108 = vdwg.mxu0
    %v109 = vmax.f32 %v104, 0.0
    %v110 = vpack.c.bf16 %v109, %v109
    %v111 = vld [vmem:[%s3] sm:$0xf]
    %v112 = vld [vmem:[%s3 + $0x4] sm:$0xf]
    %v113 = vld [vmem:[%s4] sm:$0x1]
    %v115 = vlaneseq
    %v116 = vshrl.u32 %v115, 7
    %v117 = vsub.s32 0, %v116
    %v118 = vrot.slane %v113, %v117
    %v122 = vunpack.c.l.b16 %v111
    %v123 = vunpack.c.l.b16 %v112
    %v124 = vpack.c.b16 %v123, %v122
    %vm126 = vcmask 130048
    %v128 = vsel %vm126, %v110, 0
    %130 = vmatprep.subr.bf16.mxu0 0
    %131 = vmatpush1.bf16.msra.mxu0 %v124
    %132 = vmatprep.subr.bf16.mxu0 0
    %133 = vmatpush1.bf16.msra.mxu0 0
    %134 = vmatprep.subr.bf16.mxu0 0
    %135 = vmatpush1.bf16.msra.mxu0 0
    %136 = vmatprep.subr.bf16.mxu0 0
    %137 = vmatpush1.bf16.msra.mxu0 0
    %138 = vmatprep.subr.bf16.mxu0 0
    %139 = vmatpush1.bf16.msra.mxu0 0
    %140 = vmatprep.subr.bf16.mxu0 0
    %141 = vmatpush1.bf16.msra.mxu0 0
    %142 = vmatprep.subr.bf16.mxu0 0
    %143 = vmatpush1.bf16.msra.mxu0 0
    %144 = vmatprep.subr.bf16.mxu0 0
    %145 = vmatpush1.bf16.msra.mxu0 0
    %146 = vmatprep.subr.bf16.mxu0 0
    %147 = vmatpush1.bf16.msra.mxu0 0
    %148 = vmatprep.subr.bf16.mxu0 0
    %149 = vmatpush1.bf16.msra.mxu0 0
    %150 = vmatprep.subr.bf16.mxu0 0
    %151 = vmatpush1.bf16.msra.mxu0 0
    %152 = vmatprep.subr.bf16.mxu0 0
    %153 = vmatpush1.bf16.msra.mxu0 0
    %154 = vmatprep.subr.bf16.mxu0 0
    %155 = vmatpush1.bf16.msra.mxu0 0
    %156 = vmatprep.subr.bf16.mxu0 0
    %157 = vmatpush1.bf16.msra.mxu0 0
    %158 = vmatprep.subr.bf16.mxu0 0
    %159 = vmatpush1.bf16.msra.mxu0 0
    %160 = vmatprep.subr.bf16.mxu0 0
    %161 = vmatpush1.bf16.msra.mxu0 0
    %162 = vmatprep.mubr.bf16.mxu0 0
    %163 = vmatmul.mubr.bf16.gmra.mrb[0].mxu0 %v128
    %v164 = vpop.f32.mrb[0].mxu0
    %v165 = vadd.f32 %v118, %v164
    %v166 = vpop.f32.mrb[0].mxu0
    %v167 = vpop.f32.mrb[0].mxu0
    %v168 = vpop.f32.mrb[0].mxu0
    %169 = vdwg.mxu0
    %v170 = vmax.f32 %v165, 0.0
    %v171 = vpack.c.bf16 %v170, %v170
    %v172 = vld [vmem:[%s5] sm:$0xf]
    %v173 = vld [vmem:[%s5 + $0x4] sm:$0xf]
    %v174 = vld [vmem:[%s6] sm:$0x1]
    %v176 = vlaneseq
    %v177 = vshrl.u32 %v176, 7
    %v178 = vsub.s32 0, %v177
    %v179 = vrot.slane %v174, %v178
    %v183 = vunpack.c.l.b16 %v172
    %v184 = vunpack.c.l.b16 %v173
    %v185 = vpack.c.b16 %v184, %v183
    %v188 = vsel %vm126, %v171, 0
    %190 = vmatprep.subr.bf16.mxu0 0
    %191 = vmatpush1.bf16.msra.mxu0 %v185
    %192 = vmatprep.subr.bf16.mxu0 0
    %193 = vmatpush1.bf16.msra.mxu0 0
    %194 = vmatprep.subr.bf16.mxu0 0
    %195 = vmatpush1.bf16.msra.mxu0 0
    %196 = vmatprep.subr.bf16.mxu0 0
    %197 = vmatpush1.bf16.msra.mxu0 0
    %198 = vmatprep.subr.bf16.mxu0 0
    %199 = vmatpush1.bf16.msra.mxu0 0
    %200 = vmatprep.subr.bf16.mxu0 0
    %201 = vmatpush1.bf16.msra.mxu0 0
    %202 = vmatprep.subr.bf16.mxu0 0
    %203 = vmatpush1.bf16.msra.mxu0 0
    %204 = vmatprep.subr.bf16.mxu0 0
    %205 = vmatpush1.bf16.msra.mxu0 0
    %206 = vmatprep.subr.bf16.mxu0 0
    %207 = vmatpush1.bf16.msra.mxu0 0
    %208 = vmatprep.subr.bf16.mxu0 0
    %209 = vmatpush1.bf16.msra.mxu0 0
    %210 = vmatprep.subr.bf16.mxu0 0
    %211 = vmatpush1.bf16.msra.mxu0 0
    %212 = vmatprep.subr.bf16.mxu0 0
    %213 = vmatpush1.bf16.msra.mxu0 0
    %214 = vmatprep.subr.bf16.mxu0 0
    %215 = vmatpush1.bf16.msra.mxu0 0
    %216 = vmatprep.subr.bf16.mxu0 0
    %217 = vmatpush1.bf16.msra.mxu0 0
    %218 = vmatprep.subr.bf16.mxu0 0
    %219 = vmatpush1.bf16.msra.mxu0 0
    %220 = vmatprep.subr.bf16.mxu0 0
    %221 = vmatpush1.bf16.msra.mxu0 0
    %222 = vmatprep.mubr.bf16.mxu0 0
    %223 = vmatmul.mubr.bf16.gmra.mrb[0].mxu0 %v188
    %v224 = vpop.f32.mrb[0].mxu0
    %v225 = vadd.f32 %v179, %v224
    %v226 = vpop.f32.mrb[0].mxu0
    %v227 = vpop.f32.mrb[0].mxu0
    %v228 = vpop.f32.mrb[0].mxu0
    %229 = vdwg.mxu0
    %230 = vst [vmem:[#allocation7] sm:$0xff] %v225
    // Predicated region
    $region38: #{tpu_custom_call.1} parent=1 // pred_check
      _
    $region39: #{tpu_custom_call.1} parent=1 // pred_check_branch
      %232 = sbr.rel (0) target = $region41
    $region40: #{tpu_custom_call.1} parent=1 // pred_region
      %s234 = ssub.s32 128, 128
      %235 = vsyncadd [#allocation4], %s234
      %s237 = sshll.u32 [#allocation7], 4
      %s238 = int_to_ptr.vmem [resolvable:$true] %s237
      %240 = dma.vmem_to_hbm [thread:$0]  %s238, 128, %s7, [#allocation4]
    $region41: #{tpu_custom_call.1} parent=1 // pred_fallthru
      _
    // Predicated region
    $region42: #{tpu_custom_call.1} parent=1 // pred_check
      _
    $region43: #{tpu_custom_call.1} parent=1 // pred_check_branch
      %242 = sbr.rel (0) target = $region45
    $region44: #{tpu_custom_call.1} parent=1 // pred_region
      %243 = dma.done [#allocation4], 128
    $region45: #{tpu_custom_call.1} parent=1 // pred_fallthru
      _
    %244 = vsyncpa [#allocation3], 1
    %245 = vsyncpa [#allocation6], 1
    %246 = vsyncpa [#allocation4], 1

</llo_original>
